<compile_context>
chip_gen: v6e
topology: v6e:2x2x1
jax: 0.10.0
libtpu: 0.0.40
codegen_flags: <defaults>
</compile_context>

<pallas_src>
import functools

import jax
import jax.numpy as jnp
import numpy as np
from jax.experimental import pallas as pl
from jax.experimental.pallas import tpu as pltpu

QUANTILES = (0.1, 0.5, 0.9)
LANES = 128
SUBLANES = 8


def _round_up(x, m):
    return ((x + m - 1) // m) * m


def _quantile_loss_kernel(preds_ref, target_ref, out_ref, *, quantiles):
    # preds_ref : (Q, BR, 128)  input dtype (f32 / bf16 / ...)
    # target_ref: (BR, 128)     input dtype
    # out_ref   : (8, 128)      f32 per-lane partial sums for this row tile
    target = target_ref[...].astype(jnp.float32)          # (BR, 128)
    loss = jnp.zeros_like(target)
    for qi, q in enumerate(quantiles):                     # Q is tiny & static
        err = target - preds_ref[qi].astype(jnp.float32)   # lane-dense slab
        loss = loss + jnp.maximum((q - 1.0) * err, q * err)
    br = loss.shape[0]
    # Fold sublane groups with pure VPU adds (tile-boundary-preserving reshape);
    # the cross-lane reduction happens once, outside the kernel.
    out_ref[...] = loss.reshape(br // SUBLANES, SUBLANES, LANES).sum(axis=0)


def quantile_loss(preds, target, quantiles=QUANTILES, block_rows=1024):
    """preds: (..., Q), target: (...)  ->  scalar float32 pinball loss."""
    quantiles = tuple(float(q) for q in quantiles)
    q_dim = preds.shape[-1]
    assert q_dim == len(quantiles), "last dim of preds must match #quantiles"
    assert preds.shape[:-1] == target.shape

    n = int(np.prod(target.shape)) if target.ndim > 0 else 1

    # ---- lane-dense re-layout (wrapper-side layout plumbing, no compute) ----
    rows = -(-n // LANES)                         # ceil(n / 128)
    rows8 = _round_up(rows, SUBLANES)
    br = min(_round_up(block_rows, SUBLANES), rows8)   # rows per tile (mult. of 8)
    padded_rows = _round_up(rows, br)
    padded_n = padded_rows * LANES
    num_tiles = padded_rows // br

    preds_t = jnp.moveaxis(preds, -1, 0).reshape(q_dim, n)        # (Q, N)
    preds_t = jnp.pad(preds_t, ((0, 0), (0, padded_n - n)))
    preds_t = preds_t.reshape(q_dim, padded_rows, LANES)          # (Q, R, 128)

    target_f = jnp.pad(target.reshape(n), (0, padded_n - n))
    target_f = target_f.reshape(padded_rows, LANES)               # (R, 128)

    kernel = functools.partial(_quantile_loss_kernel, quantiles=quantiles)

    partials = pl.pallas_call(
        kernel,
        out_shape=jax.ShapeDtypeStruct((num_tiles * SUBLANES, LANES), jnp.float32),
        grid_spec=pltpu.PrefetchScalarGridSpec(
            num_scalar_prefetch=0,
            grid=(num_tiles,),
            in_specs=[
                # full quantile extent, tiled over rows, full lane width
                pl.BlockSpec((q_dim, br, LANES), lambda i: (0, i, 0)),
                pl.BlockSpec((br, LANES), lambda i: (i, 0)),
            ],
            out_specs=pl.BlockSpec((SUBLANES, LANES), lambda i: (i, 0)),
        ),
        compiler_params=pltpu.CompilerParams(
            # independent per-tile outputs -> megacore sharding on v7x
            dimension_semantics=("parallel",),
        ),
    )(preds_t, target_f)

    # Single tiny cross-lane reduction + mean (zero-padded rows contribute 0).
    return jnp.sum(partials) / jnp.float32(n)


def _reference_quantile_loss(preds, target, quantiles=QUANTILES):
    # Pure-JAX reference mirroring the PyTorch module exactly (f32 accumulation).
    preds = preds.astype(jnp.float32)
    target = target.astype(jnp.float32)
    losses = []
    for i, q in enumerate(quantiles):
        errors = target - preds[..., i]
        losses.append(jnp.maximum((q - 1.0) * errors, q * errors))
    return jnp.mean(jnp.sum(jnp.stack(losses), axis=0))


if __name__ == "__main__":
    key = jax.random.PRNGKey(0)
    k1, k2, k3, k4 = jax.random.split(key, 4)

    # --- small shape matching the module's typical use: (batch, seq, Q) ---
    B, T, Q = 2, 8, len(QUANTILES)
    preds = jax.random.normal(k1, (B, T, Q), dtype=jnp.float32)
    target = jax.random.normal(k2, (B, T), dtype=jnp.float32)

    out = jax.block_until_ready(quantile_loss(preds, target))
    ref = _reference_quantile_loss(preds, target)
    np.testing.assert_allclose(np.asarray(out), np.asarray(ref), rtol=1e-5, atol=1e-6)

    # --- exercise multi-tile grid + zero-padding path (tiny block_rows) ---
    preds2 = jax.random.normal(k3, (4, 300, Q), dtype=jnp.float32)
    target2 = jax.random.normal(k4, (4, 300), dtype=jnp.float32)
    out2 = jax.block_until_ready(quantile_loss(preds2, target2, block_rows=8))
    ref2 = _reference_quantile_loss(preds2, target2)
    np.testing.assert_allclose(np.asarray(out2), np.asarray(ref2), rtol=1e-5, atol=1e-6)

    # --- bf16 inputs go straight into the kernel (cast + accumulate in f32) ---
    preds_bf = preds2.astype(jnp.bfloat16)
    target_bf = target2.astype(jnp.bfloat16)
    out_bf = jax.block_until_ready(quantile_loss(preds_bf, target_bf, block_rows=8))
    ref_bf = _reference_quantile_loss(preds_bf, target_bf)
    np.testing.assert_allclose(np.asarray(out_bf), np.asarray(ref_bf), rtol=1e-5, atol=1e-6)

    print("KERNEL_OK")
</pallas_src>

<mosaic_0001>
module attributes {stable_mosaic.version = 11 : i64} {
  func.func @_quantile_loss_kernel(%arg0: i32, %arg1: memref<3x8x128xf32, #tpu.memory_space<vmem>>, %arg2: memref<8x128xf32, #tpu.memory_space<vmem>>, %arg3: memref<8x128xf32, #tpu.memory_space<vmem>>) attributes {dimension_semantics = [#tpu.dimension_semantics<parallel>], iteration_bounds = array<i64: 1>, scalar_prefetch = 0 : i64, scratch_operands = 0 : i64, tpu.core_type = #tpu.core_type<tc>, window_params = [{transform_indices = @transform_0, window_bounds = array<i64: 3, 8, 128>}, {transform_indices = @transform_1, window_bounds = array<i64: 8, 128>}, {transform_indices = @transform_2, window_bounds = array<i64: 8, 128>}]} {
    %c0 = arith.constant 0 : index
    %c0_0 = arith.constant 0 : index
    %0 = vector.load %arg2[%c0, %c0_0] : memref<8x128xf32, #tpu.memory_space<vmem>>, vector<8x128xf32>
    %cst = arith.constant 0.000000e+00 : f32
    %1 = vector.broadcast %cst : f32 to vector<8x128xf32>
    %c0_1 = arith.constant 0 : index
    %c0_2 = arith.constant 0 : index
    %c0_3 = arith.constant 0 : index
    %2 = vector.load %arg1[%c0_1, %c0_2, %c0_3] : memref<3x8x128xf32, #tpu.memory_space<vmem>>, vector<1x8x128xf32>
    %3 = vector.shape_cast %2 : vector<1x8x128xf32> to vector<8x128xf32>
    %4 = arith.subf %0, %3 : vector<8x128xf32>
    %cst_4 = arith.constant -0.899999976 : f32
    %5 = vector.broadcast %cst_4 : f32 to vector<8x128xf32>
    %6 = arith.mulf %5, %4 : vector<8x128xf32>
    %cst_5 = arith.constant 1.000000e-01 : f32
    %7 = vector.broadcast %cst_5 : f32 to vector<8x128xf32>
    %8 = arith.mulf %7, %4 : vector<8x128xf32>
    %9 = arith.maximumf %6, %8 : vector<8x128xf32>
    %10 = arith.addf %1, %9 : vector<8x128xf32>
    %c1 = arith.constant 1 : index
    %c0_6 = arith.constant 0 : index
    %c0_7 = arith.constant 0 : index
    %11 = vector.load %arg1[%c1, %c0_6, %c0_7] : memref<3x8x128xf32, #tpu.memory_space<vmem>>, vector<1x8x128xf32>
    %12 = vector.shape_cast %11 : vector<1x8x128xf32> to vector<8x128xf32>
    %13 = arith.subf %0, %12 : vector<8x128xf32>
    %cst_8 = arith.constant -5.000000e-01 : f32
    %14 = vector.broadcast %cst_8 : f32 to vector<8x128xf32>
    %15 = arith.mulf %14, %13 : vector<8x128xf32>
    %cst_9 = arith.constant 5.000000e-01 : f32
    %16 = vector.broadcast %cst_9 : f32 to vector<8x128xf32>
    %17 = arith.mulf %16, %13 : vector<8x128xf32>
    %18 = arith.maximumf %15, %17 : vector<8x128xf32>
    %19 = arith.addf %10, %18 : vector<8x128xf32>
    %c2 = arith.constant 2 : index
    %c0_10 = arith.constant 0 : index
    %c0_11 = arith.constant 0 : index
    %20 = vector.load %arg1[%c2, %c0_10, %c0_11] : memref<3x8x128xf32, #tpu.memory_space<vmem>>, vector<1x8x128xf32>
    %21 = vector.shape_cast %20 : vector<1x8x128xf32> to vector<8x128xf32>
    %22 = arith.subf %0, %21 : vector<8x128xf32>
    %cst_12 = arith.constant -1.000000e-01 : f32
    %23 = vector.broadcast %cst_12 : f32 to vector<8x128xf32>
    %24 = arith.mulf %23, %22 : vector<8x128xf32>
    %cst_13 = arith.constant 0.899999976 : f32
    %25 = vector.broadcast %cst_13 : f32 to vector<8x128xf32>
    %26 = arith.mulf %25, %22 : vector<8x128xf32>
    %27 = arith.maximumf %24, %26 : vector<8x128xf32>
    %28 = arith.addf %19, %27 : vector<8x128xf32>
    %29 = vector.shape_cast %28 : vector<8x128xf32> to vector<1x8x128xf32>
    %cst_14 = arith.constant dense<0.000000e+00> : vector<8x128xf32>
    %30 = vector.multi_reduction <add>, %29, %cst_14 [0] : vector<1x8x128xf32> to vector<8x128xf32>
    %c0_15 = arith.constant 0 : index
    %c0_16 = arith.constant 0 : index
    %31 = vector.load %arg3[%c0_15, %c0_16] : memref<8x128xf32, #tpu.memory_space<vmem>>, vector<8x128xf32>
    tpu.vector_store %arg3[%c0_15, %c0_16], %30 {strides = array<i32>} : memref<8x128xf32, #tpu.memory_space<vmem>>, vector<8x128xf32>,
    return
  }
  func.func @transform_0(%arg0: i32) -> (i32, i32, i32) {
    %c0_i32 = arith.constant 0 : i32
    %c0_i32_0 = arith.constant 0 : i32
    %c0_i32_1 = arith.constant 0 : i32
    return %c0_i32, %arg0, %c0_i32_0 : i32, i32, i32
  }
  func.func @transform_1(%arg0: i32) -> (i32, i32) {
    %c0_i32 = arith.constant 0 : i32
    %c0_i32_0 = arith.constant 0 : i32
    return %arg0, %c0_i32 : i32, i32
  }
  func.func @transform_2(%arg0: i32) -> (i32, i32) {
    %c0_i32 = arith.constant 0 : i32
    %c0_i32_0 = arith.constant 0 : i32
    return %arg0, %c0_i32 : i32, i32
  }
}

</mosaic_0001>

<llo_original>
// kernel: tpu_custom_call.1
$region0: #{tpu_custom_call.1}
  #allocation0 [shape = 'u32[]', space=smem, size = 0x4, offset = 0x4, fixed_abs, tag = 'smem constant byte address 0x4 - core index']
  #allocation1 [shape = 'u32[144,128]{1,0:T(1,128)}', space=vmem, size = 0x12000, scoped, tag = 'internal scratch']
  %s0 = inlined_call_operand.hbm [shape: f32[3,8,128], index: 0, kind: input, shape index: {}]
  %s1 = inlined_call_operand.hbm [shape: f32[8,128], index: 1, kind: input, shape index: {}]
  %s2 = inlined_call_operand.hbm [shape: f32[8,128], index: 2, kind: output, shape index: {}]
  %s3 = sld [smem:[#allocation0]]
  $region26: #{tpu_custom_call.1} parent=0
    _
  %s5 = ssub.s32 1, %s3
  %s6 = scalar_select 0, %s5, %s3
  $region1: #{tpu_custom_call.1} parent=0
    #allocation2 [shape = 'u8[12288]{0}', space=vmem, size = 0x3000, scoped, tag = 'input window, operand 0, single buffered']
    #allocation3 [shape = 's32[1]{0}', space=sflag, size = 0x4, scoped, tag = 'scoped memory for tpu_custom_call.1']
    #allocation4 [shape = 's32[1]{0}', space=sflag, size = 0x4, scoped, tag = 'scoped memory for tpu_custom_call.1']
    #allocation5 [shape = 'u8[4096]{0}', space=vmem, size = 0x1000, scoped, tag = 'input window, operand 1, single buffered']
    #allocation6 [shape = 's32[1]{0}', space=sflag, size = 0x4, scoped, tag = 'scoped memory for tpu_custom_call.1']
    #allocation7 [shape = 'u8[4096]{0}', space=vmem, size = 0x1000, scoped, tag = 'output window, operand 0, single buffered']
    %7 = vsyncpa [#allocation3], 0
    %8 = vsyncpa [#allocation6], 0
    %9 = vsyncpa [#allocation4], 0
    // Predicated region
    $region2: #{tpu_custom_call.1} parent=1 // pred_check
      _
    $region3: #{tpu_custom_call.1} parent=1 // pred_check_branch
      %11 = sbr.rel (0) target = $region5
    $region4: #{tpu_custom_call.1} parent=1 // pred_region
      %s13 = ssub.s32 384, 384
      %14 = vsyncadd [#allocation3], %s13
      %s15 = sshll.u32 [#allocation2], 4
      %s16 = int_to_ptr.vmem [resolvable:$true] %s15
      %21 = dma.hbm_to_vmem [thread:$0]  %s0, 384, %s16, [#allocation3], 128, 128, 8
    $region5: #{tpu_custom_call.1} parent=1 // pred_fallthru
      _
    // Predicated region
    $region6: #{tpu_custom_call.1} parent=1 // pred_check
      _
    $region7: #{tpu_custom_call.1} parent=1 // pred_check_branch
      %23 = sbr.rel (0) target = $region9
    $region8: #{tpu_custom_call.1} parent=1 // pred_region
      %s25 = ssub.s32 128, 128
      %26 = vsyncadd [#allocation6], %s25
      %s28 = sshll.u32 [#allocation5], 4
      %s29 = int_to_ptr.vmem [resolvable:$true] %s28
      %31 = dma.hbm_to_vmem [thread:$0]  %s1, 128, %s29, [#allocation6]
    $region9: #{tpu_custom_call.1} parent=1 // pred_fallthru
      _
    // Predicated region
    $region10: #{tpu_custom_call.1} parent=1 // pred_check
      _
    $region11: #{tpu_custom_call.1} parent=1 // pred_check_branch
      %33 = sbr.rel (0) target = $region13
    $region12: #{tpu_custom_call.1} parent=1 // pred_region
      %34 = dma.done [#allocation3], 384
    $region13: #{tpu_custom_call.1} parent=1 // pred_fallthru
      _
    // Predicated region
    $region14: #{tpu_custom_call.1} parent=1 // pred_check
      _
    $region15: #{tpu_custom_call.1} parent=1 // pred_check_branch
      %36 = sbr.rel (0) target = $region17
    $region16: #{tpu_custom_call.1} parent=1 // pred_region
      %37 = dma.done [#allocation6], 128
    $region17: #{tpu_custom_call.1} parent=1 // pred_fallthru
      _
    %v38 = vld [vmem:[#allocation5] sm:$0xff]
    %v39 = vld [vmem:[#allocation2] sm:$0xff]
    %v40 = vsub.f32 %v38, %v39
    %v41 = vmul.f32 %v40, -0.9
    %v42 = vmul.f32 %v40, 0.1
    %v43 = vmax.f32 %v41, %v42
    %v44 = vadd.f32 %v43, 0.0
    %s45 = scalar_lea.vmem [#allocation2], 8
    %v46 = vld [vmem:[%s45] sm:$0xff]
    %v47 = vsub.f32 %v38, %v46
    %v48 = vmul.f32 %v47, -0.5
    %v49 = vmul.f32 %v47, 0.5
    %v50 = vmax.f32 %v48, %v49
    %v51 = vadd.f32 %v44, %v50
    %s52 = scalar_lea.vmem [#allocation2], 16
    %v53 = vld [vmem:[%s52] sm:$0xff]
    %v54 = vsub.f32 %v38, %v53
    %v55 = vmul.f32 %v54, -0.1
    %v56 = vmul.f32 %v54, 0.9
    %v57 = vmax.f32 %v55, %v56
    %v58 = vadd.f32 %v51, %v57
    %v59 = vadd.f32 %v58, 0.0
    %60 = vst [vmem:[#allocation7] sm:$0xff] %v59
    // Predicated region
    $region18: #{tpu_custom_call.1} parent=1 // pred_check
      _
    $region19: #{tpu_custom_call.1} parent=1 // pred_check_branch
      %62 = sbr.rel (0) target = $region21
    $region20: #{tpu_custom_call.1} parent=1 // pred_region
      %s64 = ssub.s32 128, 128
      %65 = vsyncadd [#allocation4], %s64
      %s67 = sshll.u32 [#allocation7], 4
      %s68 = int_to_ptr.vmem [resolvable:$true] %s67
      %70 = dma.vmem_to_hbm [thread:$0]  %s68, 128, %s2, [#allocation4]
    $region21: #{tpu_custom_call.1} parent=1 // pred_fallthru
      _
    // Predicated region
    $region22: #{tpu_custom_call.1} parent=1 // pred_check
      _
    $region23: #{tpu_custom_call.1} parent=1 // pred_check_branch
      %72 = sbr.rel (0) target = $region25
    $region24: #{tpu_custom_call.1} parent=1 // pred_region
      %73 = dma.done [#allocation4], 128
    $region25: #{tpu_custom_call.1} parent=1 // pred_fallthru
      _
    %74 = vsyncpa [#allocation3], 1
    %75 = vsyncpa [#allocation6], 1
    %76 = vsyncpa [#allocation4], 1

</llo_original>
